<compile_context>
chip_gen: v5e
topology: v5e:2x2
jax: 0.10.0
libtpu: 0.0.40
codegen_flags: <defaults>
</compile_context>

<pallas_src>
import numpy as np
import jax
import jax.numpy as jnp
from jax.experimental import pallas as pl
from jax.experimental.pallas import tpu as pltpu

KSIZE = 3  # convolutional_projection_kernel_size (odd, padding='same')


def _round_up(x, m):
    return ((x + m - 1) // m) * m


def _make_conv_kernel(H, W, ksize):
    """Kernel computing Conv2d(1,1,ksize,'same') on (Tb, H*W) lane-dense blocks."""
    HW = H * W
    pad = ksize // 2
    K2 = ksize * ksize
    # Flat-index offset of each tap (row-major over the embedded H x W image).
    shifts = [(dy - pad) * W + (dx - pad) for dy in range(ksize) for dx in range(ksize)]

    def kernel(coeff_ref, b_ref, x_ref, o_ref):
        # coeff_ref : (K2, H*W) VMEM, resident across grid steps.
        #             coeff[t, p] = w[t] if tap t valid at position p else 0.
        # b_ref     : (1,) SMEM scalar (conv bias).
        # x_ref     : (Tb, H*W) VMEM input block.
        # o_ref     : (Tb, H*W) VMEM output block.
        x = x_ref[...].astype(jnp.float32)

        # Bias folded into the accumulator init (no separate full-tile add).
        acc = jnp.full(x.shape, b_ref[0], dtype=jnp.float32)

        # K2 taps: each is a static lane roll of the flat image (XLU slot,
        # off the VPU/memory critical path) scaled by the precomputed per-lane
        # coefficient row (zero where the tap would step off the image, which
        # realizes the 'same' zero-padding with no in-kernel masking).
        for t in range(K2):
            s = shifts[t]
            tap = x if s == 0 else pltpu.roll(x, shift=(-s) % HW, axis=1)
            c = coeff_ref[pl.ds(t, 1), :]          # (1, H*W), broadcasts over Tb
            acc = acc + c * tap

        o_ref[...] = acc.astype(o_ref.dtype)

    return kernel


def bbox_encoder_forward(raw_grid, weight, bias, *, t_block=1024):
    """raw_grid: (T, 1, H, W) f32 -> (T, H*W) f32  (Conv2d(1,1,3,'same') + flatten)."""
    T, C, H, W = raw_grid.shape
    assert C == 1
    HW = H * W
    K2 = KSIZE * KSIZE
    pad = KSIZE // 2

    # Free, contiguous reshape (no pad, no extra HBM pass).
    x = raw_grid.reshape(T, HW).astype(jnp.float32)
    w_flat = weight.reshape(K2).astype(jnp.float32)
    b1 = bias.reshape(1).astype(jnp.float32)

    # Static tap-validity table (numpy, built at trace time), then scaled by
    # the (traced) weights: coeff[t, p] = w[t] * valid(t, p).  ~9 KiB, stays
    # resident in VMEM for the whole kernel.
    rows = np.arange(HW) // W
    cols = np.arange(HW) % W
    valid = np.zeros((K2, HW), dtype=np.float32)
    for dy in range(KSIZE):
        for dx in range(KSIZE):
            t = dy * KSIZE + dx
            rr = rows + (dy - pad)
            cc = cols + (dx - pad)
            valid[t] = ((rr >= 0) & (rr < H) & (cc >= 0) & (cc < W)).astype(np.float32)
    coeff = jnp.asarray(valid) * w_flat[:, None]        # (K2, HW)

    # T-block selection:
    #  * T <= 8           : one full block (block shape == array shape is legal).
    #  * 8 < T            : at least 2 grid steps (so the "parallel" axis can
    #                       shard over v7x's two TensorCores), rounded to a
    #                       multiple of 8 sublanes, capped at t_block to keep
    #                       double-buffered in+out blocks well inside scoped VMEM.
    if T <= 8:
        Tb = T
    else:
        Tb = min(t_block, _round_up(pl.cdiv(T, 2), 8))
    grid = (pl.cdiv(T, Tb),)

    out = pl.pallas_call(
        _make_conv_kernel(H, W, KSIZE),
        out_shape=jax.ShapeDtypeStruct((T, HW), jnp.float32),
        grid=grid,
        in_specs=[
            pl.BlockSpec((K2, HW), lambda i: (0, 0)),                 # coeff: resident
            pl.BlockSpec(memory_space=pltpu.MemorySpace.SMEM),        # bias scalar
            pl.BlockSpec((Tb, HW), lambda i: (i, 0)),                 # input block
        ],
        out_specs=pl.BlockSpec((Tb, HW), lambda i: (i, 0)),
        compiler_params=pltpu.CompilerParams(
            dimension_semantics=("parallel",),
            vmem_limit_bytes=32 * 1024 * 1024),
    )(coeff, b1, x)

    # nn.Flatten(2,3) + squeeze(1) is already the kernel's output layout.
    return out


def _reference(raw_grid, weight, bias):
    # Pure-JAX reference: PyTorch Conv2d(1,1,3,padding='same') == cross-correlation.
    out = jax.lax.conv_general_dilated(
        raw_grid, weight, window_strides=(1, 1), padding="SAME",
        dimension_numbers=("NCHW", "OIHW", "NCHW"),
        precision=jax.lax.Precision.HIGHEST)
    out = out + bias.reshape(1, 1, 1, 1)
    T, _, H, W = raw_grid.shape
    return out.reshape(T, H * W)


if __name__ == "__main__":
    key = jax.random.PRNGKey(0)
    k_x, k_w, k_b = jax.random.split(key, 3)

    T, H, W = 2, 16, 16
    raw_grid = jax.random.normal(k_x, (T, 1, H, W), dtype=jnp.float32)

    # Deterministic parameter init (Conv2d(1,1,3) shapes: weight (1,1,3,3), bias (1,)).
    fan_in = 1 * KSIZE * KSIZE
    bound = 1.0 / jnp.sqrt(fan_in)
    weight = jax.random.uniform(k_w, (1, 1, KSIZE, KSIZE), jnp.float32, -bound, bound)
    bias = jax.random.uniform(k_b, (1,), jnp.float32, -bound, bound)

    out = bbox_encoder_forward(raw_grid, weight, bias)
    out = jax.block_until_ready(out)

    ref = _reference(raw_grid, weight, bias)
    assert out.shape == (T, H * W)
    assert jnp.allclose(out, ref, atol=1e-5, rtol=1e-5), "mismatch vs reference"

    print("KERNEL_OK")
</pallas_src>

<mosaic_0001>
module attributes {stable_mosaic.version = 11 : i64} {
  func.func @kernel(%arg0: i32, %arg1: memref<9x256xf32, #tpu.memory_space<vmem>>, %arg2: memref<1xf32, #tpu.memory_space<smem>>, %arg3: memref<2x256xf32, #tpu.memory_space<vmem>>, %arg4: memref<2x256xf32, #tpu.memory_space<vmem>>) attributes {dimension_semantics = [#tpu.dimension_semantics<parallel>], iteration_bounds = array<i64: 1>, scalar_prefetch = 0 : i64, scratch_operands = 0 : i64, tpu.core_type = #tpu.core_type<tc>, window_params = [{pipeline_mode = #tpu.pipeline_mode<synchronous>, transform_indices = @transform_0, window_bounds = array<i64: 9, 256>}, {transform_indices = @transform_1, window_bounds = array<i64: 1>}, {transform_indices = @transform_2, window_bounds = array<i64: 2, 256>}, {transform_indices = @transform_3, window_bounds = array<i64: 2, 256>}]} {
    %c0 = arith.constant 0 : index
    %c0_0 = arith.constant 0 : index
    %0 = vector.load %arg3[%c0, %c0_0] : memref<2x256xf32, #tpu.memory_space<vmem>>, vector<2x256xf32>
    %c0_1 = arith.constant 0 : index
    %1 = memref.load %arg2[%c0_1] : memref<1xf32, #tpu.memory_space<smem>>
    %2 = vector.broadcast %1 : f32 to vector<2x256xf32>
    %c17_i32 = arith.constant 17 : i32
    %3 = tpu.dynamic_rotate %0 by %c17_i32 dim 1 : vector<2x256xf32>, i32 -> vector<2x256xf32>
    %c0_2 = arith.constant 0 : index
    %c0_3 = arith.constant 0 : index
    %4 = vector.load %arg1[%c0_2, %c0_3] : memref<9x256xf32, #tpu.memory_space<vmem>>, vector<1x256xf32>
    %5 = vector.broadcast %4 : vector<1x256xf32> to vector<2x256xf32>
    %6 = arith.mulf %5, %3 : vector<2x256xf32>
    %7 = arith.addf %2, %6 : vector<2x256xf32>
    %c16_i32 = arith.constant 16 : i32
    %8 = tpu.dynamic_rotate %0 by %c16_i32 dim 1 : vector<2x256xf32>, i32 -> vector<2x256xf32>
    %c1 = arith.constant 1 : index
    %c0_4 = arith.constant 0 : index
    %9 = vector.load %arg1[%c1, %c0_4] : memref<9x256xf32, #tpu.memory_space<vmem>>, vector<1x256xf32>
    %10 = vector.broadcast %9 : vector<1x256xf32> to vector<2x256xf32>
    %11 = arith.mulf %10, %8 : vector<2x256xf32>
    %12 = arith.addf %7, %11 : vector<2x256xf32>
    %c15_i32 = arith.constant 15 : i32
    %13 = tpu.dynamic_rotate %0 by %c15_i32 dim 1 : vector<2x256xf32>, i32 -> vector<2x256xf32>
    %c2 = arith.constant 2 : index
    %c0_5 = arith.constant 0 : index
    %14 = vector.load %arg1[%c2, %c0_5] : memref<9x256xf32, #tpu.memory_space<vmem>>, vector<1x256xf32>
    %15 = vector.broadcast %14 : vector<1x256xf32> to vector<2x256xf32>
    %16 = arith.mulf %15, %13 : vector<2x256xf32>
    %17 = arith.addf %12, %16 : vector<2x256xf32>
    %c1_i32 = arith.constant 1 : i32
    %18 = tpu.dynamic_rotate %0 by %c1_i32 dim 1 : vector<2x256xf32>, i32 -> vector<2x256xf32>
    %c3 = arith.constant 3 : index
    %c0_6 = arith.constant 0 : index
    %19 = vector.load %arg1[%c3, %c0_6] : memref<9x256xf32, #tpu.memory_space<vmem>>, vector<1x256xf32>
    %20 = vector.broadcast %19 : vector<1x256xf32> to vector<2x256xf32>
    %21 = arith.mulf %20, %18 : vector<2x256xf32>
    %22 = arith.addf %17, %21 : vector<2x256xf32>
    %c4 = arith.constant 4 : index
    %c0_7 = arith.constant 0 : index
    %23 = vector.load %arg1[%c4, %c0_7] : memref<9x256xf32, #tpu.memory_space<vmem>>, vector<1x256xf32>
    %24 = vector.broadcast %23 : vector<1x256xf32> to vector<2x256xf32>
    %25 = arith.mulf %24, %0 : vector<2x256xf32>
    %26 = arith.addf %22, %25 : vector<2x256xf32>
    %c255_i32 = arith.constant 255 : i32
    %27 = tpu.dynamic_rotate %0 by %c255_i32 dim 1 : vector<2x256xf32>, i32 -> vector<2x256xf32>
    %c5 = arith.constant 5 : index
    %c0_8 = arith.constant 0 : index
    %28 = vector.load %arg1[%c5, %c0_8] : memref<9x256xf32, #tpu.memory_space<vmem>>, vector<1x256xf32>
    %29 = vector.broadcast %28 : vector<1x256xf32> to vector<2x256xf32>
    %30 = arith.mulf %29, %27 : vector<2x256xf32>
    %31 = arith.addf %26, %30 : vector<2x256xf32>
    %c241_i32 = arith.constant 241 : i32
    %32 = tpu.dynamic_rotate %0 by %c241_i32 dim 1 : vector<2x256xf32>, i32 -> vector<2x256xf32>
    %c6 = arith.constant 6 : index
    %c0_9 = arith.constant 0 : index
    %33 = vector.load %arg1[%c6, %c0_9] : memref<9x256xf32, #tpu.memory_space<vmem>>, vector<1x256xf32>
    %34 = vector.broadcast %33 : vector<1x256xf32> to vector<2x256xf32>
    %35 = arith.mulf %34, %32 : vector<2x256xf32>
    %36 = arith.addf %31, %35 : vector<2x256xf32>
    %c240_i32 = arith.constant 240 : i32
    %37 = tpu.dynamic_rotate %0 by %c240_i32 dim 1 : vector<2x256xf32>, i32 -> vector<2x256xf32>
    %c7 = arith.constant 7 : index
    %c0_10 = arith.constant 0 : index
    %38 = vector.load %arg1[%c7, %c0_10] : memref<9x256xf32, #tpu.memory_space<vmem>>, vector<1x256xf32>
    %39 = vector.broadcast %38 : vector<1x256xf32> to vector<2x256xf32>
    %40 = arith.mulf %39, %37 : vector<2x256xf32>
    %41 = arith.addf %36, %40 : vector<2x256xf32>
    %c239_i32 = arith.constant 239 : i32
    %42 = tpu.dynamic_rotate %0 by %c239_i32 dim 1 : vector<2x256xf32>, i32 -> vector<2x256xf32>
    %c8 = arith.constant 8 : index
    %c0_11 = arith.constant 0 : index
    %43 = vector.load %arg1[%c8, %c0_11] : memref<9x256xf32, #tpu.memory_space<vmem>>, vector<1x256xf32>
    %44 = vector.broadcast %43 : vector<1x256xf32> to vector<2x256xf32>
    %45 = arith.mulf %44, %42 : vector<2x256xf32>
    %46 = arith.addf %41, %45 : vector<2x256xf32>
    %c0_12 = arith.constant 0 : index
    %c0_13 = arith.constant 0 : index
    %47 = vector.load %arg4[%c0_12, %c0_13] : memref<2x256xf32, #tpu.memory_space<vmem>>, vector<2x256xf32>
    tpu.vector_store %arg4[%c0_12, %c0_13], %46 {strides = array<i32>} : memref<2x256xf32, #tpu.memory_space<vmem>>, vector<2x256xf32>,
    return
  }
  func.func @transform_0(%arg0: i32) -> (i32, i32) {
    %c0_i32 = arith.constant 0 : i32
    %c0_i32_0 = arith.constant 0 : i32
    %c0_i32_1 = arith.constant 0 : i32
    return %c0_i32, %c0_i32_0 : i32, i32
  }
  func.func @transform_1(%arg0: i32) -> i32 {
    %c0_i32 = arith.constant 0 : i32
    %c0_i32_0 = arith.constant 0 : i32
    return %c0_i32 : i32
  }
  func.func @transform_2(%arg0: i32) -> (i32, i32) {
    %c0_i32 = arith.constant 0 : i32
    %c0_i32_0 = arith.constant 0 : i32
    return %arg0, %c0_i32 : i32, i32
  }
  func.func @transform_3(%arg0: i32) -> (i32, i32) {
    %c0_i32 = arith.constant 0 : i32
    %c0_i32_0 = arith.constant 0 : i32
    return %arg0, %c0_i32 : i32, i32
  }
}

</mosaic_0001>

<llo_original>
// kernel: tpu_custom_call.1
$region0: #{tpu_custom_call.1}
  #allocation0 [shape = 'u32[]', space=smem, size = 0x4, offset = 0x4, fixed_abs, tag = 'smem constant byte address 0x4 - core index']
  #allocation1 [shape = 'u32[72,128]{1,0:T(1,128)}', space=vmem, size = 0x9000, scoped, tag = 'internal scratch']
  #allocation2 [shape = 'f32[1]{0:T(128)S(6)}', space=smem, size = 0x200, scoped, tag = 'scoped memory for tpu_custom_call.1']
  %s0 = inlined_call_operand.hbm [shape: f32[9,256], index: 0, kind: input, shape index: {}]
  %s1 = inlined_call_operand.<no memory space> [shape: f32[1], index: 1, kind: input, shape index: {}]
  %s2 = inlined_call_operand.hbm [shape: f32[2,256], index: 2, kind: input, shape index: {}]
  %s3 = inlined_call_operand.hbm [shape: f32[2,256], index: 3, kind: output, shape index: {}]
  %s4 = sld [smem:[#allocation0]]
  $region30: #{tpu_custom_call.1} parent=0
    _
  %s6 = ssub.s32 1, %s4
  %s7 = scalar_select 0, %s6, %s4
  %8 = sst [smem:[#allocation2]] %s1
  $region1: #{tpu_custom_call.1} parent=0
    #allocation3 [shape = 'u8[16384]{0}', space=vmem, size = 0x4000, scoped, tag = 'input window, operand 0, single buffered']
    #allocation4 [shape = 's32[1]{0}', space=sflag, size = 0x4, scoped, tag = 'scoped memory for tpu_custom_call.1']
    #allocation5 [shape = 's32[1]{0}', space=sflag, size = 0x4, scoped, tag = 'scoped memory for tpu_custom_call.1']
    #allocation6 [shape = 'u8[2048]{0}', space=vmem, size = 0x800, scoped, tag = 'input window, operand 2, single buffered']
    #allocation7 [shape = 's32[1]{0}', space=sflag, size = 0x4, scoped, tag = 'scoped memory for tpu_custom_call.1']
    #allocation8 [shape = 'u8[2048]{0}', space=vmem, size = 0x800, scoped, tag = 'output window, operand 0, single buffered']
    %9 = vsyncpa [#allocation4], 0
    %10 = vsyncpa [#allocation7], 0
    %11 = vsyncpa [#allocation5], 0
    // Predicated region
    $region2: #{tpu_custom_call.1} parent=1 // pred_check
      _
    $region3: #{tpu_custom_call.1} parent=1 // pred_check_branch
      %13 = sbr.rel (0) target = $region5
    $region4: #{tpu_custom_call.1} parent=1 // pred_region
      %15 = vsyncadd [#allocation4], 0
      %s16 = sshll.u32 %s0, 4
      %s17 = int_to_ptr.hbm [resolvable:$true] %s16
      %s18 = sshll.u32 [#allocation3], 4
      %s19 = int_to_ptr.vmem [resolvable:$true] %s18
      %24 = dma.hbm_to_vmem [thread:$0]  %s17, 512, %s19, [#allocation4], 256, 256, 16
    $region5: #{tpu_custom_call.1} parent=1 // pred_fallthru
      _
    // Predicated region
    $region6: #{tpu_custom_call.1} parent=1 // pred_check
      _
    $region7: #{tpu_custom_call.1} parent=1 // pred_check_branch
      %26 = sbr.rel (0) target = $region9
    $region8: #{tpu_custom_call.1} parent=1 // pred_region
      _
    $region9: #{tpu_custom_call.1} parent=1 // pred_fallthru
      _
    // Predicated region
    $region10: #{tpu_custom_call.1} parent=1 // pred_check
      _
    $region11: #{tpu_custom_call.1} parent=1 // pred_check_branch
      %28 = sbr.rel (0) target = $region13
    $region12: #{tpu_custom_call.1} parent=1 // pred_region
      %30 = vsyncadd [#allocation7], 0
      %s32 = sshll.u32 %s2, 4
      %s33 = int_to_ptr.hbm [resolvable:$true] %s32
      %s34 = sshll.u32 [#allocation6], 4
      %s35 = int_to_ptr.vmem [resolvable:$true] %s34
      %37 = dma.hbm_to_vmem [thread:$0]  %s33, 64, %s35, [#allocation7]
    $region13: #{tpu_custom_call.1} parent=1 // pred_fallthru
      _
    // Predicated region
    $region14: #{tpu_custom_call.1} parent=1 // pred_check
      _
    $region15: #{tpu_custom_call.1} parent=1 // pred_check_branch
      %39 = sbr.rel (0) target = $region17
    $region16: #{tpu_custom_call.1} parent=1 // pred_region
      %41 = dma.done [#allocation4], 512
    $region17: #{tpu_custom_call.1} parent=1 // pred_fallthru
      _
    // Predicated region
    $region18: #{tpu_custom_call.1} parent=1 // pred_check
      _
    $region19: #{tpu_custom_call.1} parent=1 // pred_check_branch
      %43 = sbr.rel (0) target = $region21
    $region20: #{tpu_custom_call.1} parent=1 // pred_region
      %45 = dma.done [#allocation7], 64
    $region21: #{tpu_custom_call.1} parent=1 // pred_fallthru
      _
    %v46 = vld [vmem:[#allocation6] sm:$0xf]
    %s47 = sld [smem:[#allocation2]]
    %v48 = vstv %s47
    %50 = vst [vmem:[#allocation1] ss:$4 sm:$0xff] %v46
    %v51 = vld.sshfl [vmem:[#allocation1] sm:$0xff pattern:$0x73625140]
    %v52 = vld.sshfl [vmem:[#allocation1 + $0x8] sm:$0xff pattern:$0x73625140]
    %55 = vrot.lane.b32.xlu0 %v51, 17
    %v56 = vpop.permute.xlu0 %55
    %57 = vrot.lane.b32.xlu0 %v52, 17
    %v58 = vpop.permute.xlu0 %57
    %v59 = vlaneseq
    %v60 = vand.u32 %v59, 127
    %vm61 = vcmp.lt.s32.totalorder %v60, 17
    %v62 = vsel %vm61, %v56, %v58
    %v63 = vsel %vm61, %v58, %v56
    %v64 = vld [vmem:[#allocation3] ss:$8 sm:$0x3]
    %v66 = vperm.slane %v64, 0
    %v67 = vperm.slane %v64, 1
    %v70 = vmul.f32 %v66, %v63
    %v71 = vmul.f32 %v67, %v62
    %v72 = vadd.f32 %v48, %v70
    %v73 = vadd.f32 %v48, %v71
    %74 = vst [vmem:[#allocation1] ss:$4 sm:$0xff] %v46
    %v75 = vld.sshfl [vmem:[#allocation1] sm:$0xff pattern:$0x73625140]
    %v76 = vld.sshfl [vmem:[#allocation1 + $0x8] sm:$0xff pattern:$0x73625140]
    %79 = vrot.lane.b32.xlu0 %v75, 16
    %v80 = vpop.permute.xlu0 %79
    %81 = vrot.lane.b32.xlu0 %v76, 16
    %v82 = vpop.permute.xlu0 %81
    %vm83 = vcmp.lt.s32.totalorder %v60, 16
    %v84 = vsel %vm83, %v80, %v82
    %v85 = vsel %vm83, %v82, %v80
    %s86 = scalar_lea.vmem [#allocation3], 1
    %v87 = vld [vmem:[%s86] ss:$8 sm:$0x3]
    %v89 = vperm.slane %v87, 0
    %v90 = vperm.slane %v87, 1
    %v93 = vmul.f32 %v89, %v85
    %v94 = vmul.f32 %v90, %v84
    %v95 = vadd.f32 %v72, %v93
    %v96 = vadd.f32 %v73, %v94
    %97 = vst [vmem:[#allocation1] ss:$4 sm:$0xff] %v46
    %v98 = vld.sshfl [vmem:[#allocation1] sm:$0xff pattern:$0x73625140]
    %v99 = vld.sshfl [vmem:[#allocation1 + $0x8] sm:$0xff pattern:$0x73625140]
    %102 = vrot.lane.b32.xlu0 %v98, 15
    %v103 = vpop.permute.xlu0 %102
    %104 = vrot.lane.b32.xlu0 %v99, 15
    %v105 = vpop.permute.xlu0 %104
    %vm106 = vcmp.lt.s32.totalorder %v60, 15
    %v107 = vsel %vm106, %v103, %v105
    %v108 = vsel %vm106, %v105, %v103
    %s109 = scalar_lea.vmem [#allocation3], 2
    %v110 = vld [vmem:[%s109] ss:$8 sm:$0x3]
    %v112 = vperm.slane %v110, 0
    %v113 = vperm.slane %v110, 1
    %v116 = vmul.f32 %v112, %v108
    %v117 = vmul.f32 %v113, %v107
    %v118 = vadd.f32 %v95, %v116
    %v119 = vadd.f32 %v96, %v117
    %120 = vst [vmem:[#allocation1] ss:$4 sm:$0xff] %v46
    %v121 = vld.sshfl [vmem:[#allocation1] sm:$0xff pattern:$0x73625140]
    %v122 = vld.sshfl [vmem:[#allocation1 + $0x8] sm:$0xff pattern:$0x73625140]
    %125 = vrot.lane.b32.xlu0 %v121, 1
    %v126 = vpop.permute.xlu0 %125
    %127 = vrot.lane.b32.xlu0 %v122, 1
    %v128 = vpop.permute.xlu0 %127
    %vm129 = vcmp.lt.s32.totalorder %v60, 1
    %v130 = vsel %vm129, %v126, %v128
    %v131 = vsel %vm129, %v128, %v126
    %s132 = scalar_lea.vmem [#allocation3], 3
    %v133 = vld [vmem:[%s132] ss:$8 sm:$0x3]
    %v135 = vperm.slane %v133, 0
    %v136 = vperm.slane %v133, 1
    %v139 = vmul.f32 %v135, %v131
    %v140 = vmul.f32 %v136, %v130
    %v141 = vadd.f32 %v118, %v139
    %v142 = vadd.f32 %v119, %v140
    %s143 = scalar_lea.vmem [#allocation3], 4
    %v144 = vld [vmem:[%s143] ss:$8 sm:$0x3]
    %v146 = vperm.slane %v144, 0
    %v147 = vperm.slane %v144, 1
    %150 = vst [vmem:[#allocation1] ss:$4 sm:$0xff] %v46
    %v151 = vld.sshfl [vmem:[#allocation1] sm:$0xff pattern:$0x73625140]
    %v152 = vld.sshfl [vmem:[#allocation1 + $0x8] sm:$0xff pattern:$0x73625140]
    %v155 = vmul.f32 %v146, %v151
    %v156 = vmul.f32 %v147, %v152
    %v157 = vadd.f32 %v141, %v155
    %v158 = vadd.f32 %v142, %v156
    %159 = vst [vmem:[#allocation1] ss:$4 sm:$0xff] %v46
    %v160 = vld.sshfl [vmem:[#allocation1] sm:$0xff pattern:$0x73625140]
    %v161 = vld.sshfl [vmem:[#allocation1 + $0x8] sm:$0xff pattern:$0x73625140]
    %164 = vrot.lane.b32.xlu0 %v160, 127
    %v165 = vpop.permute.xlu0 %164
    %166 = vrot.lane.b32.xlu0 %v161, 127
    %v167 = vpop.permute.xlu0 %166
    %vm168 = vcmp.lt.s32.totalorder %v60, 127
    %v169 = vsel %vm168, %v165, %v167
    %v170 = vsel %vm168, %v167, %v165
    %s171 = scalar_lea.vmem [#allocation3], 5
    %v172 = vld [vmem:[%s171] ss:$8 sm:$0x3]
    %v174 = vperm.slane %v172, 0
    %v175 = vperm.slane %v172, 1
    %v178 = vmul.f32 %v174, %v169
    %v179 = vmul.f32 %v175, %v170
    %v180 = vadd.f32 %v157, %v178
    %v181 = vadd.f32 %v158, %v179
    %182 = vst [vmem:[#allocation1] ss:$4 sm:$0xff] %v46
    %v183 = vld.sshfl [vmem:[#allocation1] sm:$0xff pattern:$0x73625140]
    %v184 = vld.sshfl [vmem:[#allocation1 + $0x8] sm:$0xff pattern:$0x73625140]
    %187 = vrot.lane.b32.xlu0 %v183, 113
    %v188 = vpop.permute.xlu0 %187
    %189 = vrot.lane.b32.xlu0 %v184, 113
    %v190 = vpop.permute.xlu0 %189
    %vm191 = vcmp.lt.s32.totalorder %v60, 113
    %v192 = vsel %vm191, %v188, %v190
    %v193 = vsel %vm191, %v190, %v188
    %s194 = scalar_lea.vmem [#allocation3], 6
    %v195 = vld [vmem:[%s194] ss:$8 sm:$0x3]
    %v197 = vperm.slane %v195, 0
    %v198 = vperm.slane %v195, 1
    %v201 = vmul.f32 %v197, %v192
    %v202 = vmul.f32 %v198, %v193
    %v203 = vadd.f32 %v180, %v201
    %v204 = vadd.f32 %v181, %v202
    %205 = vst [vmem:[#allocation1] ss:$4 sm:$0xff] %v46
    %v206 = vld.sshfl [vmem:[#allocation1] sm:$0xff pattern:$0x73625140]
    %v207 = vld.sshfl [vmem:[#allocation1 + $0x8] sm:$0xff pattern:$0x73625140]
    %210 = vrot.lane.b32.xlu0 %v206, 112
    %v211 = vpop.permute.xlu0 %210
    %212 = vrot.lane.b32.xlu0 %v207, 112
    %v213 = vpop.permute.xlu0 %212
    %vm214 = vcmp.lt.s32.totalorder %v60, 112
    %v215 = vsel %vm214, %v211, %v213
    %v216 = vsel %vm214, %v213, %v211
    %s217 = scalar_lea.vmem [#allocation3], 7
    %v218 = vld [vmem:[%s217] ss:$8 sm:$0x3]
    %v220 = vperm.slane %v218, 0
    %v221 = vperm.slane %v218, 1
    %v224 = vmul.f32 %v220, %v215
    %v225 = vmul.f32 %v221, %v216
    %v226 = vadd.f32 %v203, %v224
    %v227 = vadd.f32 %v204, %v225
    %228 = vst [vmem:[#allocation1] ss:$4 sm:$0xff] %v46
    %v229 = vld.sshfl [vmem:[#allocation1] sm:$0xff pattern:$0x73625140]
    %v230 = vld.sshfl [vmem:[#allocation1 + $0x8] sm:$0xff pattern:$0x73625140]
    %233 = vrot.lane.b32.xlu0 %v229, 111
    %v234 = vpop.permute.xlu0 %233
    %235 = vrot.lane.b32.xlu0 %v230, 111
    %v236 = vpop.permute.xlu0 %235
    %vm237 = vcmp.lt.s32.totalorder %v60, 111
    %v238 = vsel %vm237, %v234, %v236
    %v239 = vsel %vm237, %v236, %v234
    %s240 = scalar_lea.vmem [#allocation3], 16
    %v241 = vld [vmem:[%s240] ss:$8 sm:$0x3]
    %v243 = vperm.slane %v241, 0
    %v244 = vperm.slane %v241, 1
    %v247 = vmul.f32 %v243, %v238
    %v248 = vmul.f32 %v244, %v239
    %v249 = vadd.f32 %v226, %v247
    %v250 = vadd.f32 %v227, %v248
    %v253 = vrot.slane %v250, 6
    %vm254 = vcmask 1041408
    %v255 = vsel %vm254, %v249, %v253
    %257 = vst [vmem:[#allocation8] sm:$0xf] %v255
    // Predicated region
    $region22: #{tpu_custom_call.1} parent=1 // pred_check
      _
    $region23: #{tpu_custom_call.1} parent=1 // pred_check_branch
      %259 = sbr.rel (0) target = $region25
    $region24: #{tpu_custom_call.1} parent=1 // pred_region
      %261 = vsyncadd [#allocation5], 0
      %s263 = sshll.u32 [#allocation8], 4
      %s264 = int_to_ptr.vmem [resolvable:$true] %s263
      %s265 = sshll.u32 %s3, 4
      %s266 = int_to_ptr.hbm [resolvable:$true] %s265
      %268 = dma.vmem_to_hbm [thread:$0]  %s264, 64, %s266, [#allocation5]
    $region25: #{tpu_custom_call.1} parent=1 // pred_fallthru
      _
    // Predicated region
    $region26: #{tpu_custom_call.1} parent=1 // pred_check
      _
    $region27: #{tpu_custom_call.1} parent=1 // pred_check_branch
      %270 = sbr.rel (0) target = $region29
    $region28: #{tpu_custom_call.1} parent=1 // pred_region
      %272 = dma.done [#allocation5], 64
    $region29: #{tpu_custom_call.1} parent=1 // pred_fallthru
      _
    %273 = vsyncpa [#allocation4], 1
    %274 = vsyncpa [#allocation7], 1
    %275 = vsyncpa [#allocation5], 1

</llo_original>
